<compile_context>
chip_gen: v7x
topology: tpu7x:2x2x1
jax: 0.10.0
libtpu: 0.0.40
codegen_flags: <defaults>
</compile_context>

<pallas_src>
import functools

import jax
import jax.numpy as jnp
import numpy as np
from jax.experimental import pallas as pl
from jax.experimental.pallas import tpu as pltpu


# ---------------------------------------------------------------------------
# trace-time integer helpers
# ---------------------------------------------------------------------------
def _round_down(v, m):
    return (v // m) * m


def _round_up(v, m):
    return -(-v // m) * m


def _sublane_unit(dtype):
    """Sublane tile granularity: 8 rows for 4B dtypes, 16 for bf16, 32 for 1B."""
    return max(8, 32 // max(1, jnp.dtype(dtype).itemsize))


# ---------------------------------------------------------------------------
# generation-aware planning (VMEM budget, multi-TensorCore heuristic)
# ---------------------------------------------------------------------------
@functools.lru_cache(maxsize=1)
def _hw_plan():
    """Returns (block_budget_f32_elems, vmem_limit_bytes, multi_core)."""
    vmem_cap = 128 * 1024 * 1024
    try:
        info = pltpu.get_tpu_info()
        vmem_cap = int(getattr(info, "vmem_capacity_bytes", vmem_cap))
    except Exception:
        pass
    small_vmem = vmem_cap <= 64 * 1024 * 1024     # v7x-class: 64 MiB per TC
    multi_core = small_vmem                       # v7x: 2 TCs share 3.2 TB/s HBM
    # The fused reduce body holds ~3-4x the nominal block as f32 intermediates
    # plus double-buffered in/out, so keep the nominal block well under VMEM.
    block_budget_bytes = (2 if small_vmem else 4) * 1024 * 1024
    vmem_limit = int(min(vmem_cap - 8 * 1024 * 1024,
                         max(32 * 1024 * 1024, 12 * block_budget_bytes)))
    return block_budget_bytes // 4, vmem_limit, multi_core


def _pick_nonreduced_tile(extent, other, unit, budget_elems, multi_core):
    """Tile size along the non-reduced (grid) axis.

    `other` is the fixed (un-tiled) extent of the block; `unit` the hardware
    granularity (128 lanes, or the dtype-aware sublane unit).
    """
    if extent <= unit:
        return extent
    cap = max(unit, _round_down(budget_elems // max(other, 1), unit))
    tile = extent if cap >= extent else cap        # full extent or unit-multiple
    if multi_core:
        # Split across both TensorCores; prefer an even number of blocks.
        half = max(unit, _round_up(-(-extent // 2), unit))
        tile = min(tile, half)
        cnt = -(-extent // tile)
        if cnt > 1 and cnt % 2 == 1:
            t2 = max(unit, _round_up(-(-extent // (cnt + 1)), unit))
            if -(-extent // t2) % 2 == 0:
                tile = t2
    return tile


def _dense_2d_shape(shape):
    """Flatten to a lane-dense (rows, cols) 2-D view for pointwise kernels."""
    n = int(np.prod(shape)) if len(shape) else 1
    for c in (4096, 2048, 1024, 512, 256, 128):
        if n % c == 0 and n // c >= 8:
            return (n // c, c)
    for c in (4096, 2048, 1024, 512, 256, 128):
        if n % c == 0:
            return (n // c, c)
    c = 1
    for d in reversed(shape):
        c *= int(d)
        if c >= 128:
            break
    c = max(1, c)
    if n % c != 0:
        return (1, n)
    return (n // c, c)


# ---------------------------------------------------------------------------
# fused kernel body
# ---------------------------------------------------------------------------
def _abs_int_pow(x, p):
    """|x|**p for small integer p via repeated multiplies (no exp/log per elem)."""
    if p == 1:
        return jnp.abs(x)
    if p == 2:
        return x * x
    a = jnp.abs(x)
    r = a
    for _ in range(int(p) - 1):
        r = r * a
    return r


def _lp_normalize(x, p, axis):
    eps = 1e-12                      # matches torch.nn.functional.normalize
    if p == 2:
        s = jnp.sum(x * x, axis=axis, keepdims=True)
        nrm = jnp.sqrt(s)
    elif p == 1:
        nrm = jnp.sum(jnp.abs(x), axis=axis, keepdims=True)
    elif isinstance(p, int) and 2 < p <= 8:
        s = jnp.sum(_abs_int_pow(x, p), axis=axis, keepdims=True)
        nrm = jnp.exp(jnp.log(jnp.maximum(s, 1e-30)) * (1.0 / p))
    else:
        # TODO(synk): large / non-integer p uses per-element pow (rare path).
        s = jnp.sum(jnp.abs(x) ** p, axis=axis, keepdims=True)
        nrm = jnp.exp(jnp.log(jnp.maximum(s, 1e-30)) * (1.0 / p))
    # Exact divide on the reduced vector only (cheap; kernel is mem-bound).
    return x * (1.0 / jnp.maximum(nrm, eps))


def _group_kernel(x_ref, o_ref, *, ops, axis):
    """Apply a fused sequence of scale ops to one VMEM tile.

    ops: tuple of (kind, p); reduce ops reduce over `axis` of the 2-D tile.
    """
    needs_f32 = any(kind != "relu" for kind, _ in ops)
    x = x_ref[...]
    if needs_f32:
        x = x.astype(jnp.float32)
    for kind, p in ops:
        if kind == "relu":
            x = jnp.maximum(x, 0)
        elif kind == "softmax":
            m = jnp.max(x, axis=axis, keepdims=True)
            e = jnp.exp(x - m)
            s = jnp.sum(e, axis=axis, keepdims=True)
            x = e * (1.0 / s)              # exact; s >= 1 after max-subtraction
        elif kind == "normalize":
            x = _lp_normalize(x, p, axis)
        else:
            raise ValueError(f"unknown scale op {kind!r}")
    o_ref[...] = x.astype(o_ref.dtype)


# ---------------------------------------------------------------------------
# pallas_call wrappers (one HBM pass per fused group)
# ---------------------------------------------------------------------------
def _call_sublane(x2, ops):
    """x2: (C, R); reduce over axis 0 (sublanes); lanes stay dense."""
    C, R = x2.shape
    budget, vmem_limit, multi_core = _hw_plan()
    TL = _pick_nonreduced_tile(R, C, 128, budget, multi_core)
    grid = (pl.cdiv(R, TL),)
    kernel = functools.partial(_group_kernel, ops=ops, axis=0)
    return pl.pallas_call(
        kernel,
        out_shape=jax.ShapeDtypeStruct((C, R), x2.dtype),
        grid_spec=pltpu.PrefetchScalarGridSpec(
            num_scalar_prefetch=0,
            grid=grid,
            in_specs=[pl.BlockSpec((C, TL), lambda i: (0, i))],
            out_specs=pl.BlockSpec((C, TL), lambda i: (0, i)),
        ),
        compiler_params=pltpu.CompilerParams(
            dimension_semantics=("parallel",),
            vmem_limit_bytes=vmem_limit,
        ),
    )(x2)


def _call_lane(x2, ops):
    """x2: (R, C); reduce over axis -1 (lanes)."""
    R, C = x2.shape
    budget, vmem_limit, multi_core = _hw_plan()
    su = _sublane_unit(x2.dtype)
    TR = _pick_nonreduced_tile(R, C, su, budget, multi_core)
    grid = (pl.cdiv(R, TR),)
    kernel = functools.partial(_group_kernel, ops=ops, axis=-1)
    return pl.pallas_call(
        kernel,
        out_shape=jax.ShapeDtypeStruct((R, C), x2.dtype),
        grid_spec=pltpu.PrefetchScalarGridSpec(
            num_scalar_prefetch=0,
            grid=grid,
            in_specs=[pl.BlockSpec((TR, C), lambda i: (i, 0))],
            out_specs=pl.BlockSpec((TR, C), lambda i: (i, 0)),
        ),
        compiler_params=pltpu.CompilerParams(
            dimension_semantics=("parallel",),
            vmem_limit_bytes=vmem_limit,
        ),
    )(x2)


def _call_pointwise(x, ops):
    """Pointwise-only group (ReLU chain): dense 2-D flatten, full tiles."""
    orig_shape = x.shape
    R, C = _dense_2d_shape(orig_shape)
    x2 = x.reshape(R, C)
    budget, vmem_limit, multi_core = _hw_plan()
    su = _sublane_unit(x2.dtype)
    if C <= 128:
        TL = C
    else:
        cap = max(128, _round_down(budget // (2 * su), 128))
        TL = C if cap >= C else cap
    TR = _pick_nonreduced_tile(R, TL, su, budget, multi_core)
    grid = (pl.cdiv(R, TR), pl.cdiv(C, TL))
    kernel = functools.partial(_group_kernel, ops=ops, axis=None)
    out2 = pl.pallas_call(
        kernel,
        out_shape=jax.ShapeDtypeStruct((R, C), x2.dtype),
        grid_spec=pltpu.PrefetchScalarGridSpec(
            num_scalar_prefetch=0,
            grid=grid,
            in_specs=[pl.BlockSpec((TR, TL), lambda i, j: (i, j))],
            out_specs=pl.BlockSpec((TR, TL), lambda i, j: (i, j)),
        ),
        compiler_params=pltpu.CompilerParams(
            dimension_semantics=("parallel", "parallel"),
            vmem_limit_bytes=vmem_limit,
        ),
    )(x2)
    return out2.reshape(orig_shape)


def _apply_group(x, ops, dim):
    """Apply one fused group; `dim` is the shared reduce dim (None = pointwise)."""
    if dim is None:
        return _call_pointwise(x, ops)

    ndim = x.ndim
    d = dim % ndim
    shape = x.shape

    if ndim == 1:
        return _call_lane(x.reshape(1, shape[0]), ops).reshape(shape)

    if d == 0:
        # Contiguous reshape (no transpose): reduce over sublanes; the
        # flattened non-reduced dims sit on the (dense) lane axis.
        C = shape[0]
        R = int(np.prod(shape[1:]))
        return _call_sublane(x.reshape(C, R), ops).reshape(shape)

    if d == ndim - 1:
        C = shape[-1]
        R = int(np.prod(shape[:-1]))
        return _call_lane(x.reshape(R, C), ops).reshape(shape)

    # middle dim: fall back to a transpose
    # TODO(synk): add a transpose-free 3-D (B, C, T) path for middle dims.
    xm = jnp.moveaxis(x, d, -1)
    C = xm.shape[-1]
    R = int(np.prod(xm.shape[:-1]))
    out2 = _call_lane(xm.reshape(R, C), ops)
    return jnp.moveaxis(out2.reshape(xm.shape), -1, d)


# ---------------------------------------------------------------------------
# op grouping (fuse consecutive same-dim controllers + pointwise neighbors)
# ---------------------------------------------------------------------------
def _build_groups(specs, ndim):
    groups = []
    cur_ops, cur_dim = [], None
    for kind, dim, p in specs:
        if kind == "relu":                      # pointwise: joins current group
            cur_ops.append(("relu", None))
        else:
            d = dim % ndim if ndim > 0 else 0
            if cur_dim is None or cur_dim == d:
                cur_dim = d
                cur_ops.append((kind, p))
            else:
                groups.append((tuple(cur_ops), cur_dim))
                cur_ops, cur_dim = [(kind, p)], d
    if cur_ops:
        groups.append((tuple(cur_ops), cur_dim))
    return groups


@functools.partial(jax.jit, static_argnames=("specs",))
def _run_pipeline(x, specs):
    ret = x
    for ops, dim in _build_groups(specs, x.ndim):
        ret = _apply_group(ret, ops, dim)
    return ret


# ---------------------------------------------------------------------------
# public controllers (mirror the PyTorch classes)
# ---------------------------------------------------------------------------
def softmax_scale(x, dim=0, p=1):
    del p
    return _run_pipeline(x, specs=(("softmax", int(dim), 1),))


def normalize_scale(x, dim=0, p=2):
    return _run_pipeline(x, specs=(("normalize", int(dim), p),))


def relu_scale(x, dim=0, p=1):
    del dim, p
    return _run_pipeline(x, specs=(("relu", 0, 1),))


class ScaleControllerBase:
    kind = None
    default_p = 1

    def __call__(self, x, dim=0, p=1):
        raise NotImplementedError


class SoftmaxScaleController(ScaleControllerBase):
    kind = "softmax"
    default_p = 1

    def __call__(self, x, dim=0, p=1):
        return softmax_scale(x, dim=dim, p=p)


class NormalizeScaleController(ScaleControllerBase):
    kind = "normalize"
    default_p = 2

    def __call__(self, x, dim=0, p=2):
        return normalize_scale(x, dim=dim, p=p)


class ReluScaleController(ScaleControllerBase):
    kind = "relu"
    default_p = 1

    def __call__(self, x, dim=0, p=1):
        return relu_scale(x, dim=dim, p=p)


class MixedScaleController:
    """Pallas port of MixedScaleController: apply controllers in given order.

    Consecutive controllers that share the same reduce dim (plus any pointwise
    ReLUs between them) are fused into a single Pallas kernel (one HBM pass).

    NOTE: the PyTorch reference iterates `zip(self.controller_lst)` (a bug that
    drops dim_lst/p_lst); the intended semantics — zip controllers with their
    dims and ps — is implemented here.
    """

    def __init__(self, controller_lst):
        self.controller_lst = list(controller_lst)

    def __call__(self, x, dim_lst=None, p_lst=None):
        n = len(self.controller_lst)
        dims = list(dim_lst) if dim_lst is not None else [0] * n
        ps = (list(p_lst) if p_lst is not None
              else [c.default_p for c in self.controller_lst])
        specs = tuple((c.kind, int(d), p)
                      for c, d, p in zip(self.controller_lst, dims, ps))
        return _run_pipeline(x, specs=specs)


# ---------------------------------------------------------------------------
# self-test
# ---------------------------------------------------------------------------
if __name__ == "__main__":
    key = jax.random.PRNGKey(0)
    x = jax.random.normal(key, (2, 4, 16, 16), dtype=jnp.float32)

    # mixed chain: relu + softmax(dim=0) fuse into one kernel; normalize(dim=-1)
    # is a second kernel  ->  2 HBM passes total.
    mixed = MixedScaleController(
        [ReluScaleController(), SoftmaxScaleController(), NormalizeScaleController()]
    )
    dim_lst = [0, 0, -1]
    p_lst = [1, 1, 2]
    y = jax.block_until_ready(mixed(x, dim_lst=dim_lst, p_lst=p_lst))

    # pure-JAX reference for the same pipeline
    r = jnp.maximum(x, 0.0)
    r = jax.nn.softmax(r, axis=0)
    nrm = jnp.sqrt(jnp.sum(r * r, axis=-1, keepdims=True))
    ref = r / jnp.maximum(nrm, 1e-12)
    np.testing.assert_allclose(np.asarray(y), np.asarray(ref), atol=2e-3, rtol=2e-3)

    # softmax alone: default dim=0 (sublane-reduce path, no transpose)
    y0 = jax.block_until_ready(softmax_scale(x, dim=0))
    np.testing.assert_allclose(
        np.asarray(y0), np.asarray(jax.nn.softmax(x, axis=0)), atol=2e-3, rtol=2e-3
    )

    # softmax on the last dim (lane-reduce path)
    y1 = jax.block_until_ready(softmax_scale(x, dim=-1))
    np.testing.assert_allclose(
        np.asarray(y1), np.asarray(jax.nn.softmax(x, axis=-1)), atol=2e-3, rtol=2e-3
    )

    # general-p normalize (integer-p repeated-multiply path)
    y3 = jax.block_until_ready(normalize_scale(x, dim=-1, p=3))
    s3 = jnp.sum(jnp.abs(x) ** 3, axis=-1, keepdims=True) ** (1.0 / 3.0)
    ref3 = x / jnp.maximum(s3, 1e-12)
    np.testing.assert_allclose(np.asarray(y3), np.asarray(ref3), atol=2e-3, rtol=2e-3)

    # standalone ReLU (dense-flatten pointwise path)
    yr = jax.block_until_ready(relu_scale(x))
    np.testing.assert_allclose(np.asarray(yr), np.asarray(jnp.maximum(x, 0.0)))

    # bf16 input (dtype-aware tiling; widen to f32 in-register)
    xb = x.astype(jnp.bfloat16)
    yb = jax.block_until_ready(softmax_scale(xb, dim=-1))
    refb = jax.nn.softmax(xb.astype(jnp.float32), axis=-1)
    np.testing.assert_allclose(
        np.asarray(yb.astype(jnp.float32)), np.asarray(refb), atol=2e-2, rtol=2e-2
    )

    print("KERNEL_OK")
</pallas_src>

<mosaic_0001>
module attributes {stable_mosaic.version = 11 : i64} {
  func.func @_group_kernel(%arg0: i32, %arg1: memref<128x16xf32, #tpu.memory_space<vmem>>, %arg2: memref<128x16xf32, #tpu.memory_space<vmem>>) attributes {dimension_semantics = [#tpu.dimension_semantics<parallel>], iteration_bounds = array<i64: 1>, scalar_prefetch = 0 : i64, scratch_operands = 0 : i64, tpu.core_type = #tpu.core_type<tc>, window_params = [{transform_indices = @transform_0, window_bounds = array<i64: 128, 16>}, {transform_indices = @transform_1, window_bounds = array<i64: 128, 16>}]} {
    %c0 = arith.constant 0 : index
    %c0_0 = arith.constant 0 : index
    %0 = vector.load %arg1[%c0, %c0_0] : memref<128x16xf32, #tpu.memory_space<vmem>>, vector<128x16xf32>
    %1 = arith.mulf %0, %0 : vector<128x16xf32>
    %cst = arith.constant dense<0.000000e+00> : vector<128xf32>
    %2 = vector.multi_reduction <add>, %1, %cst [1] : vector<128x16xf32> to vector<128xf32>
    %3 = vector.shape_cast %2 : vector<128xf32> to vector<128x1xf32>
    %4 = math.sqrt %3 : vector<128x1xf32>
    %cst_1 = arith.constant 9.99999996E-13 : f32
    %5 = vector.broadcast %cst_1 : f32 to vector<128x1xf32>
    %6 = arith.maximumf %4, %5 : vector<128x1xf32>
    %cst_2 = arith.constant 1.000000e+00 : f32
    %7 = vector.broadcast %cst_2 : f32 to vector<128x1xf32>
    %8 = arith.divf %7, %6 : vector<128x1xf32>
    %9 = vector.broadcast %8 : vector<128x1xf32> to vector<128x16xf32>
    %10 = arith.mulf %0, %9 : vector<128x16xf32>
    %c0_3 = arith.constant 0 : index
    %c0_4 = arith.constant 0 : index
    %11 = vector.load %arg2[%c0_3, %c0_4] : memref<128x16xf32, #tpu.memory_space<vmem>>, vector<128x16xf32>
    tpu.vector_store %arg2[%c0_3, %c0_4], %10 {strides = array<i32>} : memref<128x16xf32, #tpu.memory_space<vmem>>, vector<128x16xf32>,
    return
  }
  func.func @transform_0(%arg0: i32) -> (i32, i32) {
    %c0_i32 = arith.constant 0 : i32
    %c0_i32_0 = arith.constant 0 : i32
    return %arg0, %c0_i32 : i32, i32
  }
  func.func @transform_1(%arg0: i32) -> (i32, i32) {
    %c0_i32 = arith.constant 0 : i32
    %c0_i32_0 = arith.constant 0 : i32
    return %arg0, %c0_i32 : i32, i32
  }
}

module attributes {stable_mosaic.version = 11 : i64} {
  func.func @_group_kernel(%arg0: i32, %arg1: memref<2x1024xf32, #tpu.memory_space<vmem>>, %arg2: memref<2x1024xf32, #tpu.memory_space<vmem>>) attributes {dimension_semantics = [#tpu.dimension_semantics<parallel>], iteration_bounds = array<i64: 1>, scalar_prefetch = 0 : i64, scratch_operands = 0 : i64, tpu.core_type = #tpu.core_type<tc>, window_params = [{transform_indices = @transform_0, window_bounds = array<i64: 2, 1024>}, {transform_indices = @transform_1, window_bounds = array<i64: 2, 1024>}]} {
    %c0 = arith.constant 0 : index
    %c0_0 = arith.constant 0 : index
    %0 = vector.load %arg1[%c0, %c0_0] : memref<2x1024xf32, #tpu.memory_space<vmem>>, vector<2x1024xf32>
    %cst = arith.constant 0.000000e+00 : f32
    %1 = vector.broadcast %cst : f32 to vector<2x1024xf32>
    %2 = arith.maximumf %0, %1 : vector<2x1024xf32>
    %cst_1 = arith.constant dense<0xFF800000> : vector<1024xf32>
    %3 = vector.multi_reduction <maximumf>, %2, %cst_1 [0] : vector<2x1024xf32> to vector<1024xf32>
    %4 = vector.shape_cast %3 : vector<1024xf32> to vector<1x1024xf32>
    %5 = vector.broadcast %4 : vector<1x1024xf32> to vector<2x1024xf32>
    %6 = arith.subf %2, %5 : vector<2x1024xf32>
    %7 = math.exp %6 : vector<2x1024xf32>
    %cst_2 = arith.constant dense<0.000000e+00> : vector<1024xf32>
    %8 = vector.multi_reduction <add>, %7, %cst_2 [0] : vector<2x1024xf32> to vector<1024xf32>
    %9 = vector.shape_cast %8 : vector<1024xf32> to vector<1x1024xf32>
    %cst_3 = arith.constant 1.000000e+00 : f32
    %10 = vector.broadcast %cst_3 : f32 to vector<1x1024xf32>
    %11 = arith.divf %10, %9 : vector<1x1024xf32>
    %12 = vector.broadcast %11 : vector<1x1024xf32> to vector<2x1024xf32>
    %13 = arith.mulf %7, %12 : vector<2x1024xf32>
    %c0_4 = arith.constant 0 : index
    %c0_5 = arith.constant 0 : index
    %14 = vector.load %arg2[%c0_4, %c0_5] : memref<2x1024xf32, #tpu.memory_space<vmem>>, vector<2x1024xf32>
    tpu.vector_store %arg2[%c0_4, %c0_5], %13 {strides = array<i32>} : memref<2x1024xf32, #tpu.memory_space<vmem>>, vector<2x1024xf32>,
    return
  }
  func.func @transform_0(%arg0: i32) -> (i32, i32) {
    %c0_i32 = arith.constant 0 : i32
    %c0_i32_0 = arith.constant 0 : i32
    return %c0_i32, %arg0 : i32, i32
  }
  func.func @transform_1(%arg0: i32) -> (i32, i32) {
    %c0_i32 = arith.constant 0 : i32
    %c0_i32_0 = arith.constant 0 : i32
    return %c0_i32, %arg0 : i32, i32
  }
}

</mosaic_0001>

<llo_original>
// kernel: _run_pipeline.3
$region0: #{_run_pipeline.3}
  #allocation0 [shape = 'u32[]', space=smem, size = 0x4, offset = 0x4, fixed_abs, tag = 'smem constant byte address 0x4 - core index']
  #allocation1 [shape = 'u32[144,128]{1,0:T(1,128)}', space=vmem, size = 0x12000, scoped, tag = 'internal scratch']
  %s0 = inlined_call_operand.vmem [shape: f32[128,16], index: 0, kind: input, shape index: {}]
  %s1 = inlined_call_operand.hbm [shape: f32[128,16], index: 1, kind: output, shape index: {}]
  %s2 = sld [smem:[#allocation0]]
  $region14: #{_run_pipeline.3} parent=0
    _
  %s4 = ssub.s32 1, %s2
  %s5 = scalar_select 0, %s4, %s2
  $region1: #{_run_pipeline.3} parent=0
    #allocation2 [shape = 'u8[65536]{0}', space=vmem, size = 0x10000, scoped, tag = 'output window, operand 0, single buffered']
    #allocation3 [shape = 's32[1]{0}', space=sflag, size = 0x4, scoped, tag = 'scoped memory for _run_pipeline.3']
    %6 = vsyncpa [#allocation3], 0
    // Predicated region
    $region2: #{_run_pipeline.3} parent=1 // pred_check
      _
    $region3: #{_run_pipeline.3} parent=1 // pred_check_branch
      %8 = sbr.rel (0) target = $region5
    $region4: #{_run_pipeline.3} parent=1 // pred_region
      _
    $region5: #{_run_pipeline.3} parent=1 // pred_fallthru
      _
    %v9 = vld [vmem:[%s0] sm:$0xff]
    %v10 = vld [vmem:[%s0 + $0x8] sm:$0xff]
    %v11 = vld [vmem:[%s0 + $0x10] sm:$0xff]
    %v12 = vld [vmem:[%s0 + $0x18] sm:$0xff]
    %v13 = vld [vmem:[%s0 + $0x20] sm:$0xff]
    %v14 = vld [vmem:[%s0 + $0x28] sm:$0xff]
    %v15 = vld [vmem:[%s0 + $0x30] sm:$0xff]
    %v16 = vld [vmem:[%s0 + $0x38] sm:$0xff]
    %v17 = vld [vmem:[%s0 + $0x40] sm:$0xff]
    %v18 = vld [vmem:[%s0 + $0x48] sm:$0xff]
    %v19 = vld [vmem:[%s0 + $0x50] sm:$0xff]
    %v20 = vld [vmem:[%s0 + $0x58] sm:$0xff]
    %v21 = vld [vmem:[%s0 + $0x60] sm:$0xff]
    %v22 = vld [vmem:[%s0 + $0x68] sm:$0xff]
    %v23 = vld [vmem:[%s0 + $0x70] sm:$0xff]
    %v24 = vld [vmem:[%s0 + $0x78] sm:$0xff]
    %v25 = vmul.f32 %v9, %v9
    %v26 = vmul.f32 %v10, %v10
    %v27 = vmul.f32 %v11, %v11
    %v28 = vmul.f32 %v12, %v12
    %v29 = vmul.f32 %v13, %v13
    %v30 = vmul.f32 %v14, %v14
    %v31 = vmul.f32 %v15, %v15
    %v32 = vmul.f32 %v16, %v16
    %v33 = vmul.f32 %v17, %v17
    %v34 = vmul.f32 %v18, %v18
    %v35 = vmul.f32 %v19, %v19
    %v36 = vmul.f32 %v20, %v20
    %v37 = vmul.f32 %v21, %v21
    %v38 = vmul.f32 %v22, %v22
    %v39 = vmul.f32 %v23, %v23
    %v40 = vmul.f32 %v24, %v24
    %vm41 = vcmask 130048
    %v42 = vsel %vm41, %v25, 0.0
    %43 = vadd.xlane.f32.xlu0 %v42
    %v44 = vpop.xlane.xlu0 %43
    %v45 = vsel %vm41, %v26, 0.0
    %46 = vadd.xlane.f32.xlu0 %v45
    %v47 = vpop.xlane.xlu0 %46
    %v48 = vsel %vm41, %v27, 0.0
    %49 = vadd.xlane.f32.xlu0 %v48
    %v50 = vpop.xlane.xlu0 %49
    %v51 = vsel %vm41, %v28, 0.0
    %52 = vadd.xlane.f32.xlu0 %v51
    %v53 = vpop.xlane.xlu0 %52
    %v54 = vsel %vm41, %v29, 0.0
    %55 = vadd.xlane.f32.xlu0 %v54
    %v56 = vpop.xlane.xlu0 %55
    %v57 = vsel %vm41, %v30, 0.0
    %58 = vadd.xlane.f32.xlu0 %v57
    %v59 = vpop.xlane.xlu0 %58
    %v60 = vsel %vm41, %v31, 0.0
    %61 = vadd.xlane.f32.xlu0 %v60
    %v62 = vpop.xlane.xlu0 %61
    %v63 = vsel %vm41, %v32, 0.0
    %64 = vadd.xlane.f32.xlu0 %v63
    %v65 = vpop.xlane.xlu0 %64
    %v66 = vsel %vm41, %v33, 0.0
    %67 = vadd.xlane.f32.xlu0 %v66
    %v68 = vpop.xlane.xlu0 %67
    %v69 = vsel %vm41, %v34, 0.0
    %70 = vadd.xlane.f32.xlu0 %v69
    %v71 = vpop.xlane.xlu0 %70
    %v72 = vsel %vm41, %v35, 0.0
    %73 = vadd.xlane.f32.xlu0 %v72
    %v74 = vpop.xlane.xlu0 %73
    %v75 = vsel %vm41, %v36, 0.0
    %76 = vadd.xlane.f32.xlu0 %v75
    %v77 = vpop.xlane.xlu0 %76
    %v78 = vsel %vm41, %v37, 0.0
    %79 = vadd.xlane.f32.xlu0 %v78
    %v80 = vpop.xlane.xlu0 %79
    %v81 = vsel %vm41, %v38, 0.0
    %82 = vadd.xlane.f32.xlu0 %v81
    %v83 = vpop.xlane.xlu0 %82
    %v84 = vsel %vm41, %v39, 0.0
    %85 = vadd.xlane.f32.xlu0 %v84
    %v86 = vpop.xlane.xlu0 %85
    %v87 = vsel %vm41, %v40, 0.0
    %88 = vadd.xlane.f32.xlu0 %v87
    %v89 = vpop.xlane.xlu0 %88
    %v90 = vrsqrt.pop %v44
    %v91 = vmul.f32 %v44, %v90
    %vm92 = vcmp.eq.f32.partialorder %v44, inf
    %v93 = vsel %vm92, %v44, %v91
    %vm94 = vcmp.eq.f32.partialorder %v44, 0.0
    %v95 = vand.u32 %v44, 2147483648
    %v96 = vsel %vm94, %v95, %v93
    %v97 = vrsqrt.pop %v47
    %v98 = vmul.f32 %v47, %v97
    %vm99 = vcmp.eq.f32.partialorder %v47, inf
    %v100 = vsel %vm99, %v47, %v98
    %vm101 = vcmp.eq.f32.partialorder %v47, 0.0
    %v102 = vand.u32 %v47, 2147483648
    %v103 = vsel %vm101, %v102, %v100
    %v104 = vrsqrt.pop %v50
    %v105 = vmul.f32 %v50, %v104
    %vm106 = vcmp.eq.f32.partialorder %v50, inf
    %v107 = vsel %vm106, %v50, %v105
    %vm108 = vcmp.eq.f32.partialorder %v50, 0.0
    %v109 = vand.u32 %v50, 2147483648
    %v110 = vsel %vm108, %v109, %v107
    %v111 = vrsqrt.pop %v53
    %v112 = vmul.f32 %v53, %v111
    %vm113 = vcmp.eq.f32.partialorder %v53, inf
    %v114 = vsel %vm113, %v53, %v112
    %vm115 = vcmp.eq.f32.partialorder %v53, 0.0
    %v116 = vand.u32 %v53, 2147483648
    %v117 = vsel %vm115, %v116, %v114
    %v118 = vrsqrt.pop %v56
    %v119 = vmul.f32 %v56, %v118
    %vm120 = vcmp.eq.f32.partialorder %v56, inf
    %v121 = vsel %vm120, %v56, %v119
    %vm122 = vcmp.eq.f32.partialorder %v56, 0.0
    %v123 = vand.u32 %v56, 2147483648
    %v124 = vsel %vm122, %v123, %v121
    %v125 = vrsqrt.pop %v59
    %v126 = vmul.f32 %v59, %v125
    %vm127 = vcmp.eq.f32.partialorder %v59, inf
    %v128 = vsel %vm127, %v59, %v126
    %vm129 = vcmp.eq.f32.partialorder %v59, 0.0
    %v130 = vand.u32 %v59, 2147483648
    %v131 = vsel %vm129, %v130, %v128
    %v132 = vrsqrt.pop %v62
    %v133 = vmul.f32 %v62, %v132
    %vm134 = vcmp.eq.f32.partialorder %v62, inf
    %v135 = vsel %vm134, %v62, %v133
    %vm136 = vcmp.eq.f32.partialorder %v62, 0.0
    %v137 = vand.u32 %v62, 2147483648
    %v138 = vsel %vm136, %v137, %v135
    %v139 = vrsqrt.pop %v65
    %v140 = vmul.f32 %v65, %v139
    %vm141 = vcmp.eq.f32.partialorder %v65, inf
    %v142 = vsel %vm141, %v65, %v140
    %vm143 = vcmp.eq.f32.partialorder %v65, 0.0
    %v144 = vand.u32 %v65, 2147483648
    %v145 = vsel %vm143, %v144, %v142
    %v146 = vrsqrt.pop %v68
    %v147 = vmul.f32 %v68, %v146
    %vm148 = vcmp.eq.f32.partialorder %v68, inf
    %v149 = vsel %vm148, %v68, %v147
    %vm150 = vcmp.eq.f32.partialorder %v68, 0.0
    %v151 = vand.u32 %v68, 2147483648
    %v152 = vsel %vm150, %v151, %v149
    %v153 = vrsqrt.pop %v71
    %v154 = vmul.f32 %v71, %v153
    %vm155 = vcmp.eq.f32.partialorder %v71, inf
    %v156 = vsel %vm155, %v71, %v154
    %vm157 = vcmp.eq.f32.partialorder %v71, 0.0
    %v158 = vand.u32 %v71, 2147483648
    %v159 = vsel %vm157, %v158, %v156
    %v160 = vrsqrt.pop %v74
    %v161 = vmul.f32 %v74, %v160
    %vm162 = vcmp.eq.f32.partialorder %v74, inf
    %v163 = vsel %vm162, %v74, %v161
    %vm164 = vcmp.eq.f32.partialorder %v74, 0.0
    %v165 = vand.u32 %v74, 2147483648
    %v166 = vsel %vm164, %v165, %v163
    %v167 = vrsqrt.pop %v77
    %v168 = vmul.f32 %v77, %v167
    %vm169 = vcmp.eq.f32.partialorder %v77, inf
    %v170 = vsel %vm169, %v77, %v168
    %vm171 = vcmp.eq.f32.partialorder %v77, 0.0
    %v172 = vand.u32 %v77, 2147483648
    %v173 = vsel %vm171, %v172, %v170
    %v174 = vrsqrt.pop %v80
    %v175 = vmul.f32 %v80, %v174
    %vm176 = vcmp.eq.f32.partialorder %v80, inf
    %v177 = vsel %vm176, %v80, %v175
    %vm178 = vcmp.eq.f32.partialorder %v80, 0.0
    %v179 = vand.u32 %v80, 2147483648
    %v180 = vsel %vm178, %v179, %v177
    %v181 = vrsqrt.pop %v83
    %v182 = vmul.f32 %v83, %v181
    %vm183 = vcmp.eq.f32.partialorder %v83, inf
    %v184 = vsel %vm183, %v83, %v182
    %vm185 = vcmp.eq.f32.partialorder %v83, 0.0
    %v186 = vand.u32 %v83, 2147483648
    %v187 = vsel %vm185, %v186, %v184
    %v188 = vrsqrt.pop %v86
    %v189 = vmul.f32 %v86, %v188
    %vm190 = vcmp.eq.f32.partialorder %v86, inf
    %v191 = vsel %vm190, %v86, %v189
    %vm192 = vcmp.eq.f32.partialorder %v86, 0.0
    %v193 = vand.u32 %v86, 2147483648
    %v194 = vsel %vm192, %v193, %v191
    %v195 = vrsqrt.pop %v89
    %v196 = vmul.f32 %v89, %v195
    %vm197 = vcmp.eq.f32.partialorder %v89, inf
    %v198 = vsel %vm197, %v89, %v196
    %vm199 = vcmp.eq.f32.partialorder %v89, 0.0
    %v200 = vand.u32 %v89, 2147483648
    %v201 = vsel %vm199, %v200, %v198
    %v202 = vmax.f32 %v96, 1e-12
    %v203 = vmax.f32 %v103, 1e-12
    %v204 = vmax.f32 %v110, 1e-12
    %v205 = vmax.f32 %v117, 1e-12
    %v206 = vmax.f32 %v124, 1e-12
    %v207 = vmax.f32 %v131, 1e-12
    %v208 = vmax.f32 %v138, 1e-12
    %v209 = vmax.f32 %v145, 1e-12
    %v210 = vmax.f32 %v152, 1e-12
    %v211 = vmax.f32 %v159, 1e-12
    %v212 = vmax.f32 %v166, 1e-12
    %v213 = vmax.f32 %v173, 1e-12
    %v214 = vmax.f32 %v180, 1e-12
    %v215 = vmax.f32 %v187, 1e-12
    %v216 = vmax.f32 %v194, 1e-12
    %v217 = vmax.f32 %v201, 1e-12
    %v218 = vrcp.pop %v202
    %v219 = vmul.f32 1.0, %v218
    %v220 = vrcp.pop %v203
    %v221 = vmul.f32 1.0, %v220
    %v222 = vrcp.pop %v204
    %v223 = vmul.f32 1.0, %v222
    %v224 = vrcp.pop %v205
    %v225 = vmul.f32 1.0, %v224
    %v226 = vrcp.pop %v206
    %v227 = vmul.f32 1.0, %v226
    %v228 = vrcp.pop %v207
    %v229 = vmul.f32 1.0, %v228
    %v230 = vrcp.pop %v208
    %v231 = vmul.f32 1.0, %v230
    %v232 = vrcp.pop %v209
    %v233 = vmul.f32 1.0, %v232
    %v234 = vrcp.pop %v210
    %v235 = vmul.f32 1.0, %v234
    %v236 = vrcp.pop %v211
    %v237 = vmul.f32 1.0, %v236
    %v238 = vrcp.pop %v212
    %v239 = vmul.f32 1.0, %v238
    %v240 = vrcp.pop %v213
    %v241 = vmul.f32 1.0, %v240
    %v242 = vrcp.pop %v214
    %v243 = vmul.f32 1.0, %v242
    %v244 = vrcp.pop %v215
    %v245 = vmul.f32 1.0, %v244
    %v246 = vrcp.pop %v216
    %v247 = vmul.f32 1.0, %v246
    %v248 = vrcp.pop %v217
    %v249 = vmul.f32 1.0, %v248
    %v250 = vmul.f32 %v9, %v219
    %v251 = vmul.f32 %v10, %v221
    %v252 = vmul.f32 %v11, %v223
    %v253 = vmul.f32 %v12, %v225
    %v254 = vmul.f32 %v13, %v227
    %v255 = vmul.f32 %v14, %v229
    %v256 = vmul.f32 %v15, %v231
    %v257 = vmul.f32 %v16, %v233
    %v258 = vmul.f32 %v17, %v235
    %v259 = vmul.f32 %v18, %v237
    %v260 = vmul.f32 %v19, %v239
    %v261 = vmul.f32 %v20, %v241
    %v262 = vmul.f32 %v21, %v243
    %v263 = vmul.f32 %v22, %v245
    %v264 = vmul.f32 %v23, %v247
    %v265 = vmul.f32 %v24, %v249
    %266 = vst.msk [vmem:[#allocation2] sm:$0xff] %vm41, %v250
    %267 = vst.msk [vmem:[#allocation2 + $0x8] sm:$0xff] %vm41, %v251
    %268 = vst.msk [vmem:[#allocation2 + $0x10] sm:$0xff] %vm41, %v252
    %269 = vst.msk [vmem:[#allocation2 + $0x18] sm:$0xff] %vm41, %v253
    %270 = vst.msk [vmem:[#allocation2 + $0x20] sm:$0xff] %vm41, %v254
    %271 = vst.msk [vmem:[#allocation2 + $0x28] sm:$0xff] %vm41, %v255
    %272 = vst.msk [vmem:[#allocation2 + $0x30] sm:$0xff] %vm41, %v256
    %273 = vst.msk [vmem:[#allocation2 + $0x38] sm:$0xff] %vm41, %v257
    %274 = vst.msk [vmem:[#allocation2 + $0x40] sm:$0xff] %vm41, %v258
    %275 = vst.msk [vmem:[#allocation2 + $0x48] sm:$0xff] %vm41, %v259
    %276 = vst.msk [vmem:[#allocation2 + $0x50] sm:$0xff] %vm41, %v260
    %277 = vst.msk [vmem:[#allocation2 + $0x58] sm:$0xff] %vm41, %v261
    %278 = vst.msk [vmem:[#allocation2 + $0x60] sm:$0xff] %vm41, %v262
    %279 = vst.msk [vmem:[#allocation2 + $0x68] sm:$0xff] %vm41, %v263
    %280 = vst.msk [vmem:[#allocation2 + $0x70] sm:$0xff] %vm41, %v264
    %281 = vst.msk [vmem:[#allocation2 + $0x78] sm:$0xff] %vm41, %v265
    // Predicated region
    $region6: #{_run_pipeline.3} parent=1 // pred_check
      _
    $region7: #{_run_pipeline.3} parent=1 // pred_check_branch
      %283 = sbr.rel (0) target = $region9
    $region8: #{_run_pipeline.3} parent=1 // pred_region
      %s285 = ssub.s32 2048, 2048
      %286 = vsyncadd [#allocation3], %s285
      %s287 = sshll.u32 [#allocation2], 4
      %s288 = int_to_ptr.vmem [resolvable:$true] %s287
      %293 = dma.vmem_to_hbm [thread:$0]  %s288, 2048, %s1, [#allocation3], 128, 128, 8
    $region9: #{_run_pipeline.3} parent=1 // pred_fallthru
      _
    // Predicated region
    $region10: #{_run_pipeline.3} parent=1 // pred_check
      _
    $region11: #{_run_pipeline.3} parent=1 // pred_check_branch
      %295 = sbr.rel (0) target = $region13
    $region12: #{_run_pipeline.3} parent=1 // pred_region
      %296 = dma.done [#allocation3], 2048
    $region13: #{_run_pipeline.3} parent=1 // pred_fallthru
      _
    %297 = vsyncpa [#allocation3], 1

// kernel: _run_pipeline.2
$region0: #{_run_pipeline.2}
  #allocation0 [shape = 'u32[]', space=smem, size = 0x4, offset = 0x4, fixed_abs, tag = 'smem constant byte address 0x4 - core index']
  #allocation1 [shape = 'u32[144,128]{1,0:T(1,128)}', space=vmem, size = 0x12000, scoped, tag = 'internal scratch']
  %s0 = inlined_call_operand.vmem [shape: f32[2,1024], index: 0, kind: input, shape index: {}]
  %s1 = inlined_call_operand.vmem [shape: f32[2,1024], index: 1, kind: output, shape index: {}]
  %s2 = sld [smem:[#allocation0]]
  $region14: #{_run_pipeline.2} parent=0
    _
  %s4 = ssub.s32 1, %s2
  %s5 = scalar_select 0, %s4, %s2
  // Predicated region
  $region2: #{_run_pipeline.2} parent=0 // pred_check
    _
  $region3: #{_run_pipeline.2} parent=0 // pred_check_branch
    %7 = sbr.rel (0) target = $region5
  $region4: #{_run_pipeline.2} parent=0 // pred_region
    _
  $region5: #{_run_pipeline.2} parent=0 // pred_fallthru
    _
  %v8 = vld [vmem:[%s0] sm:$0xff]
  %v9 = vld [vmem:[%s0 + $0x8] sm:$0xff]
  %v10 = vmax.f32 %v8, 0.0
  %v11 = vmax.f32 %v9, 0.0
  %v14 = vcombine.high %v10, %v10
  %v16 = vunpack.c.l.s4 1983009808
  %v17 = vunpack.c.0.s8 %v16
  %v18 = vlaneseq
  %v19 = vshrl.u32 %v18, 7
  %v20 = vsub.s32 %v17, %v19
  %v21 = vrot.slane %v10, %v20
  %v23 = vunpack.c.l.s4 1983009808
  %v24 = vunpack.c.0.s8 %v23
  %v25 = vlaneseq
  %v26 = vshrl.u32 %v25, 7
  %v27 = vsub.s32 %v24, %v26
  %v28 = vrot.slane %v14, %v27
  %v29 = vcombine.high %v21, %v21
  %v30 = vcombine.high %v28, %v28
  %v31 = vcombine.high %v11, %v11
  %v33 = vunpack.c.l.s4 1983009808
  %v34 = vunpack.c.0.s8 %v33
  %v35 = vlaneseq
  %v36 = vshrl.u32 %v35, 7
  %v37 = vsub.s32 %v34, %v36
  %v38 = vrot.slane %v11, %v37
  %v40 = vunpack.c.l.s4 1983009808
  %v41 = vunpack.c.0.s8 %v40
  %v42 = vlaneseq
  %v43 = vshrl.u32 %v42, 7
  %v44 = vsub.s32 %v41, %v43
  %v45 = vrot.slane %v31, %v44
  %v46 = vcombine.high %v38, %v38
  %v47 = vcombine.high %v45, %v45
  %vm56 = vcmask 1041408
  %v57 = vsel %vm56, %v21, -inf
  %v58 = vrot.slane %v57, 4
  %v59 = vmax.f32 %v57, %v58
  %v60 = vrot.slane %v59, 2
  %v61 = vmax.f32 %v59, %v60
  %v62 = vrot.slane %v61, 1
  %v63 = vmax.f32 %v61, %v62
  %v64 = vsel %vm56, %v29, -inf
  %v65 = vrot.slane %v64, 4
  %v66 = vmax.f32 %v64, %v65
  %v67 = vrot.slane %v66, 2
  %v68 = vmax.f32 %v66, %v67
  %v69 = vrot.slane %v68, 1
  %v70 = vmax.f32 %v68, %v69
  %v71 = vsel %vm56, %v28, -inf
  %v72 = vrot.slane %v71, 4
  %v73 = vmax.f32 %v71, %v72
  %v74 = vrot.slane %v73, 2
  %v75 = vmax.f32 %v73, %v74
  %v76 = vrot.slane %v75, 1
  %v77 = vmax.f32 %v75, %v76
  %v78 = vsel %vm56, %v30, -inf
  %v79 = vrot.slane %v78, 4
  %v80 = vmax.f32 %v78, %v79
  %v81 = vrot.slane %v80, 2
  %v82 = vmax.f32 %v80, %v81
  %v83 = vrot.slane %v82, 1
  %v84 = vmax.f32 %v82, %v83
  %v85 = vsel %vm56, %v38, -inf
  %v86 = vrot.slane %v85, 4
  %v87 = vmax.f32 %v85, %v86
  %v88 = vrot.slane %v87, 2
  %v89 = vmax.f32 %v87, %v88
  %v90 = vrot.slane %v89, 1
  %v91 = vmax.f32 %v89, %v90
  %v92 = vsel %vm56, %v46, -inf
  %v93 = vrot.slane %v92, 4
  %v94 = vmax.f32 %v92, %v93
  %v95 = vrot.slane %v94, 2
  %v96 = vmax.f32 %v94, %v95
  %v97 = vrot.slane %v96, 1
  %v98 = vmax.f32 %v96, %v97
  %v99 = vsel %vm56, %v45, -inf
  %v100 = vrot.slane %v99, 4
  %v101 = vmax.f32 %v99, %v100
  %v102 = vrot.slane %v101, 2
  %v103 = vmax.f32 %v101, %v102
  %v104 = vrot.slane %v103, 1
  %v105 = vmax.f32 %v103, %v104
  %v106 = vsel %vm56, %v47, -inf
  %v107 = vrot.slane %v106, 4
  %v108 = vmax.f32 %v106, %v107
  %v109 = vrot.slane %v108, 2
  %v110 = vmax.f32 %v108, %v109
  %v111 = vrot.slane %v110, 1
  %v112 = vmax.f32 %v110, %v111
  %v121 = vcombine.low %v63, %v70
  %v122 = vcombine.low %v77, %v84
  %v124 = vunpack.c.l.s4 1983009808
  %v125 = vunpack.c.0.s8 %v124
  %v126 = vlaneseq
  %v127 = vshrl.u32 %v126, 7
  %v128 = vsub.s32 %v125, %v127
  %v129 = vrot.slane %v121, %v128
  %v131 = vunpack.c.l.s4 1983009808
  %v132 = vunpack.c.0.s8 %v131
  %v133 = vlaneseq
  %v134 = vshrl.u32 %v133, 7
  %v135 = vsub.s32 %v132, %v134
  %v136 = vrot.slane %v122, %v135
  %v137 = vcombine.low %v129, %v136
  %v138 = vcombine.low %v91, %v98
  %v139 = vcombine.low %v105, %v112
  %v141 = vunpack.c.l.s4 1983009808
  %v142 = vunpack.c.0.s8 %v141
  %v143 = vlaneseq
  %v144 = vshrl.u32 %v143, 7
  %v145 = vsub.s32 %v142, %v144
  %v146 = vrot.slane %v138, %v145
  %v148 = vunpack.c.l.s4 1983009808
  %v149 = vunpack.c.0.s8 %v148
  %v150 = vlaneseq
  %v151 = vshrl.u32 %v150, 7
  %v152 = vsub.s32 %v149, %v151
  %v153 = vrot.slane %v139, %v152
  %v154 = vcombine.low %v146, %v153
  %v157 = vsub.f32 %v10, %v137
  %v158 = vsub.f32 %v11, %v154
  %v159 = vmul.f32 %v157, 1.442695
  %v160 = vpow.pop %v159
  %v161 = vmul.f32 %v158, 1.442695
  %v162 = vpow.pop %v161
  %v165 = vcombine.high %v160, %v160
  %v167 = vunpack.c.l.s4 1983009808
  %v168 = vunpack.c.0.s8 %v167
  %v169 = vlaneseq
  %v170 = vshrl.u32 %v169, 7
  %v171 = vsub.s32 %v168, %v170
  %v172 = vrot.slane %v160, %v171
  %v174 = vunpack.c.l.s4 1983009808
  %v175 = vunpack.c.0.s8 %v174
  %v176 = vlaneseq
  %v177 = vshrl.u32 %v176, 7
  %v178 = vsub.s32 %v175, %v177
  %v179 = vrot.slane %v165, %v178
  %v180 = vcombine.high %v172, %v172
  %v181 = vcombine.high %v179, %v179
  %v182 = vcombine.high %v162, %v162
  %v184 = vunpack.c.l.s4 1983009808
  %v185 = vunpack.c.0.s8 %v184
  %v186 = vlaneseq
  %v187 = vshrl.u32 %v186, 7
  %v188 = vsub.s32 %v185, %v187
  %v189 = vrot.slane %v162, %v188
  %v191 = vunpack.c.l.s4 1983009808
  %v192 = vunpack.c.0.s8 %v191
  %v193 = vlaneseq
  %v194 = vshrl.u32 %v193, 7
  %v195 = vsub.s32 %v192, %v194
  %v196 = vrot.slane %v182, %v195
  %v197 = vcombine.high %v189, %v189
  %v198 = vcombine.high %v196, %v196
  %v207 = vsel %vm56, %v172, 0.0
  %v208 = vrot.slane %v207, 4
  %v209 = vadd.f32 %v207, %v208
  %v210 = vrot.slane %v209, 2
  %v211 = vadd.f32 %v209, %v210
  %v212 = vrot.slane %v211, 1
  %v213 = vadd.f32 %v211, %v212
  %v214 = vsel %vm56, %v180, 0.0
  %v215 = vrot.slane %v214, 4
  %v216 = vadd.f32 %v214, %v215
  %v217 = vrot.slane %v216, 2
  %v218 = vadd.f32 %v216, %v217
  %v219 = vrot.slane %v218, 1
  %v220 = vadd.f32 %v218, %v219
  %v221 = vsel %vm56, %v179, 0.0
  %v222 = vrot.slane %v221, 4
  %v223 = vadd.f32 %v221, %v222
  %v224 = vrot.slane %v223, 2
  %v225 = vadd.f32 %v223, %v224
  %v226 = vrot.slane %v225, 1
  %v227 = vadd.f32 %v225, %v226
  %v228 = vsel %vm56, %v181, 0.0
  %v229 = vrot.slane %v228, 4
  %v230 = vadd.f32 %v228, %v229
  %v231 = vrot.slane %v230, 2
  %v232 = vadd.f32 %v230, %v231
  %v233 = vrot.slane %v232, 1
  %v234 = vadd.f32 %v232, %v233
  %v235 = vsel %vm56, %v189, 0.0
  %v236 = vrot.slane %v235, 4
  %v237 = vadd.f32 %v235, %v236
  %v238 = vrot.slane %v237, 2
  %v239 = vadd.f32 %v237, %v238
  %v240 = vrot.slane %v239, 1
  %v241 = vadd.f32 %v239, %v240
  %v242 = vsel %vm56, %v197, 0.0
  %v243 = vrot.slane %v242, 4
  %v244 = vadd.f32 %v242, %v243
  %v245 = vrot.slane %v244, 2
  %v246 = vadd.f32 %v244, %v245
  %v247 = vrot.slane %v246, 1
  %v248 = vadd.f32 %v246, %v247
  %v249 = vsel %vm56, %v196, 0.0
  %v250 = vrot.slane %v249, 4
  %v251 = vadd.f32 %v249, %v250
  %v252 = vrot.slane %v251, 2
  %v253 = vadd.f32 %v251, %v252
  %v254 = vrot.slane %v253, 1
  %v255 = vadd.f32 %v253, %v254
  %v256 = vsel %vm56, %v198, 0.0
  %v257 = vrot.slane %v256, 4
  %v258 = vadd.f32 %v256, %v257
  %v259 = vrot.slane %v258, 2
  %v260 = vadd.f32 %v258, %v259
  %v261 = vrot.slane %v260, 1
  %v262 = vadd.f32 %v260, %v261
  %v263 = vrcp.pop %v213
  %v264 = vmul.f32 1.0, %v263
  %v265 = vrcp.pop %v220
  %v266 = vmul.f32 1.0, %v265
  %v267 = vrcp.pop %v227
  %v268 = vmul.f32 1.0, %v267
  %v269 = vrcp.pop %v234
  %v270 = vmul.f32 1.0, %v269
  %v271 = vrcp.pop %v241
  %v272 = vmul.f32 1.0, %v271
  %v273 = vrcp.pop %v248
  %v274 = vmul.f32 1.0, %v273
  %v275 = vrcp.pop %v255
  %v276 = vmul.f32 1.0, %v275
  %v277 = vrcp.pop %v262
  %v278 = vmul.f32 1.0, %v277
  %v287 = vcombine.low %v264, %v266
  %v288 = vcombine.low %v268, %v270
  %v290 = vunpack.c.l.s4 1983009808
  %v291 = vunpack.c.0.s8 %v290
  %v292 = vlaneseq
  %v293 = vshrl.u32 %v292, 7
  %v294 = vsub.s32 %v291, %v293
  %v295 = vrot.slane %v287, %v294
  %v297 = vunpack.c.l.s4 1983009808
  %v298 = vunpack.c.0.s8 %v297
  %v299 = vlaneseq
  %v300 = vshrl.u32 %v299, 7
  %v301 = vsub.s32 %v298, %v300
  %v302 = vrot.slane %v288, %v301
  %v303 = vcombine.low %v295, %v302
  %v304 = vcombine.low %v272, %v274
  %v305 = vcombine.low %v276, %v278
  %v307 = vunpack.c.l.s4 1983009808
  %v308 = vunpack.c.0.s8 %v307
  %v309 = vlaneseq
  %v310 = vshrl.u32 %v309, 7
  %v311 = vsub.s32 %v308, %v310
  %v312 = vrot.slane %v304, %v311
  %v314 = vunpack.c.l.s4 1983009808
  %v315 = vunpack.c.0.s8 %v314
  %v316 = vlaneseq
  %v317 = vshrl.u32 %v316, 7
  %v318 = vsub.s32 %v315, %v317
  %v319 = vrot.slane %v305, %v318
  %v320 = vcombine.low %v312, %v319
  %v323 = vmul.f32 %v160, %v303
  %v324 = vmul.f32 %v162, %v320
  %325 = vst [vmem:[%s1] sm:$0xff] %v323
  %326 = vst [vmem:[%s1 + $0x8] sm:$0xff] %v324
  // Predicated region
  $region6: #{_run_pipeline.2} parent=0 // pred_check
    _
  $region7: #{_run_pipeline.2} parent=0 // pred_check_branch
    %328 = sbr.rel (0) target = $region9
  $region8: #{_run_pipeline.2} parent=0 // pred_region
    _
  $region9: #{_run_pipeline.2} parent=0 // pred_fallthru
    _
  // Predicated region
  $region10: #{_run_pipeline.2} parent=0 // pred_check
    _
  $region11: #{_run_pipeline.2} parent=0 // pred_check_branch
    %330 = sbr.rel (0) target = $region13
  $region12: #{_run_pipeline.2} parent=0 // pred_region
    _
  $region13: #{_run_pipeline.2} parent=0 // pred_fallthru
    _

</llo_original>
